<compile_context>
chip_gen: v5e
topology: v5e:2x2
jax: 0.10.0
libtpu: 0.0.40
codegen_flags: <defaults>
</compile_context>

<pallas_src>
import functools

import jax
import jax.numpy as jnp
from jax.experimental import pallas as pl
from jax.experimental.pallas import tpu as pltpu


_TAPS = tuple((dy, dx) for dy in (-1, 0, 1) for dx in (-1, 0, 1))
_CENTER = 4  # (dy, dx) == (0, 0)


def _residual_kernel(x_ref, m_ref, w1_ref, w2_ref, o_ref, *, W, mxu_dtype):
    # x_ref : (B*C,    HW)   B images x C channels on sublanes, HW on lanes
    # m_ref : (9,      HW)   precomputed 0/1 border masks (grid-resident)
    # w1_ref: (9, B*Ch, B*C) per-tap block-diagonal 3x3 weights (resident)
    # w2_ref: (B*Cout, B*Ch) block-diagonal 1x1 weights (resident)
    # o_ref : (B*Cout, HW)
    HW = x_ref.shape[-1]
    x = x_ref[...]                                 # (B*C, HW)
    h = jnp.maximum(x, 0.0).astype(jnp.float32)    # ReLU before conv3x3
    masks = m_ref[...]                             # (9, HW) f32, hoisted calc
    cdt = jnp.float32 if mxu_dtype is None else mxu_dtype

    # 3x3 conv as 9 accumulated per-tap matmuls; neighbours come from lane
    # rolls (XLU slot), zero padding from the precomputed masks.
    acc = None
    for t, (dy, dx) in enumerate(_TAPS):
        s = dy * W + dx                            # flattened tap offset
        shifted = h if s == 0 else pltpu.roll(h, (-s) % HW, 1)
        tap = shifted if t == _CENTER else shifted * masks[t:t + 1]
        contrib = jnp.dot(w1_ref[t], tap.astype(cdt),
                          preferred_element_type=jnp.float32)
        acc = contrib if acc is None else acc + contrib

    hmid = jnp.maximum(acc, 0.0)                   # ReLU after conv3x3, f32
    out = jnp.dot(w2_ref[...], hmid.astype(cdt),   # 1x1 conv
                  preferred_element_type=jnp.float32)

    # Residual add with the original (un-ReLU'd) x, f32 accumulation,
    # full-width lane-dense store.
    o_ref[...] = (x.astype(jnp.float32) + out).astype(o_ref.dtype)


def _pick_images_per_block(N, C, sublane=8):
    """Smallest B with N % B == 0 and (B*C) % sublane == 0 (fallback B=N)."""
    cands = [b for b in range(1, N + 1)
             if N % b == 0 and ((b * C) % sublane == 0 or b == N)]
    aligned = [b for b in cands if (b * C) % sublane == 0]
    pool = aligned if aligned else cands           # cands always contains N
    multi = [b for b in pool if N // b >= 2]       # keep >=2 steps if possible
    return min(multi) if multi else min(pool)


def residual_layer_nchw(x_nchw, w1_oihw, w2_oihw, *, mxu_dtype=None):
    """PyTorch-style entry point.

    x_nchw : (N, C, H, W)
    w1_oihw: (Ch, C, 3, 3)    3x3 conv weight (PyTorch OIHW, bias-free)
    w2_oihw: (Cout, Ch, 1, 1) 1x1 conv weight (PyTorch OIHW, bias-free)
    Requires Cout == C (residual add).  H*W must be a multiple of 128.
    """
    N, C, H, W = x_nchw.shape
    Ch = w1_oihw.shape[0]
    Cout = w2_oihw.shape[0]
    assert w1_oihw.shape == (Ch, C, 3, 3)
    assert w2_oihw.shape[:2] == (Cout, Ch)
    assert Cout == C, "residual add requires in_channels == out_channels"
    HW = H * W
    assert HW % 128 == 0, "H*W must be lane-aligned (multiple of 128)"

    B = _pick_images_per_block(N, C)               # images per grid step
    G = N // B                                     # grid steps
    BC, BCh, BCo = B * C, B * Ch, B * Cout

    # Free row-major view: (N, C, H, W) -> (N*C, HW).  No transposes, no pad.
    x_rows = x_nchw.reshape(N * C, HW)

    # Hoisted border masks for the 8 non-centre taps (kept as a full (9, HW)
    # table so tap index == mask row).  Built once, VMEM-resident in-kernel.
    pos = jnp.arange(HW, dtype=jnp.int32)
    row, col = pos // W, pos % W
    masks = jnp.stack(
        [((row + dy >= 0) & (row + dy < H) & (col + dx >= 0) & (col + dx < W))
         for (dy, dx) in _TAPS]).astype(jnp.float32)          # (9, HW)

    # One-time weight repack:
    #   (Ch, C, 3, 3) -> (9, Ch, C)   tap-major, t = (dy+1)*3 + (dx+1)
    # then block-diagonal over the B images packed on the sublane axis:
    #   w1_big[t] = kron(I_B, w1_taps[t])  : (9, B*Ch, B*C)
    #   w2_big    = kron(I_B, w2)          : (B*Cout, B*Ch)
    w1_taps = jnp.transpose(w1_oihw, (2, 3, 0, 1)).reshape(9, Ch, C)
    w2_mat = w2_oihw.reshape(Cout, Ch)
    eye = jnp.eye(B, dtype=w1_taps.dtype)
    w1_big = jnp.einsum("ij,tab->tiajb", eye, w1_taps).reshape(9, BCh, BC)
    w2_big = jnp.einsum("ij,ab->iajb", eye, w2_mat).reshape(BCo, BCh)
    if mxu_dtype is not None:                      # cast once, in the wrapper
        w1_big = w1_big.astype(mxu_dtype)
        w2_big = w2_big.astype(mxu_dtype)

    kernel = functools.partial(_residual_kernel, W=W, mxu_dtype=mxu_dtype)

    x_isz = jnp.dtype(x_nchw.dtype).itemsize
    w_isz = jnp.dtype(w1_big.dtype).itemsize
    flops = G * 2 * HW * (9 * BC * BCh + BCh * BCo)
    bytes_accessed = ((N * C * HW + N * Cout * HW) * x_isz
                      + (w1_big.size + w2_big.size) * w_isz
                      + masks.size * 4)

    # Explicit VMEM budget: double-buffered x/y blocks + resident masks/weights
    # + f32 working set, with generous margin (clamped to v7x's 64 MiB).
    est = (2 * BC * HW * x_isz + 2 * BCo * HW * x_isz + masks.size * 4
           + (w1_big.size + w2_big.size) * w_isz + 4 * BCh * HW * 4)
    vmem_limit = int(min(max(8 * est, 16 << 20), 64 << 20))

    y_rows = pl.pallas_call(
        kernel,
        out_shape=jax.ShapeDtypeStruct((N * Cout, HW), x_nchw.dtype),
        grid_spec=pltpu.PrefetchScalarGridSpec(
            num_scalar_prefetch=0,
            grid=(G,),
            in_specs=[
                pl.BlockSpec((BC, HW), lambda g: (g, 0)),
                pl.BlockSpec((9, HW), lambda g: (0, 0)),
                pl.BlockSpec((9, BCh, BC), lambda g: (0, 0, 0)),
                pl.BlockSpec((BCo, BCh), lambda g: (0, 0)),
            ],
            out_specs=pl.BlockSpec((BCo, HW), lambda g: (g, 0)),
        ),
        compiler_params=pltpu.CompilerParams(
            dimension_semantics=("parallel",),
            vmem_limit_bytes=vmem_limit),
        cost_estimate=pl.CostEstimate(
            flops=flops, transcendentals=0, bytes_accessed=bytes_accessed),
    )(x_rows, masks, w1_big, w2_big)

    return y_rows.reshape(N, Cout, H, W)


def _reference_nchw(x, w1_oihw, w2_oihw):
    h = jax.nn.relu(x)
    h = jax.lax.conv_general_dilated(
        h, w1_oihw, window_strides=(1, 1), padding=((1, 1), (1, 1)),
        dimension_numbers=("NCHW", "OIHW", "NCHW"))
    h = jax.nn.relu(h)
    h = jax.lax.conv_general_dilated(
        h, w2_oihw, window_strides=(1, 1), padding="VALID",
        dimension_numbers=("NCHW", "OIHW", "NCHW"))
    return x + h


if __name__ == "__main__":
    # Module config: in_channels = out_channels = 4, res_h_dim = 8
    N, C, H, W = 2, 4, 16, 16
    RES_H = 8

    key = jax.random.PRNGKey(0)
    kx, kw1, kw2 = jax.random.split(key, 3)

    x = jax.random.normal(kx, (N, C, H, W), dtype=jnp.float32)
    # PyTorch-style OIHW weights (bias-free convs).
    w1 = jax.random.normal(kw1, (RES_H, C, 3, 3), dtype=jnp.float32) * 0.1
    w2 = jax.random.normal(kw2, (C, RES_H, 1, 1), dtype=jnp.float32) * 0.1

    y = residual_layer_nchw(x, w1, w2)
    y = jax.block_until_ready(y)

    # Correctness check against a pure-JAX reference.
    y_ref = _reference_nchw(x, w1, w2)
    assert y.shape == (N, C, H, W)
    err = float(jnp.max(jnp.abs(y - y_ref)))
    assert jnp.allclose(y, y_ref, atol=1e-4, rtol=1e-4), f"max abs err = {err}"

    print("KERNEL_OK")
</pallas_src>

<mosaic_0001>
module attributes {stable_mosaic.version = 11 : i64} {
  func.func @_residual_kernel(%arg0: i32, %arg1: memref<8x256xf32, #tpu.memory_space<vmem>>, %arg2: memref<9x256xf32, #tpu.memory_space<vmem>>, %arg3: memref<9x16x8xf32, #tpu.memory_space<vmem>>, %arg4: memref<8x16xf32, #tpu.memory_space<vmem>>, %arg5: memref<8x256xf32, #tpu.memory_space<vmem>>) attributes {dimension_semantics = [#tpu.dimension_semantics<parallel>], iteration_bounds = array<i64: 1>, scalar_prefetch = 0 : i64, scratch_operands = 0 : i64, tpu.core_type = #tpu.core_type<tc>, window_params = [{transform_indices = @transform_0, window_bounds = array<i64: 8, 256>}, {pipeline_mode = #tpu.pipeline_mode<synchronous>, transform_indices = @transform_1, window_bounds = array<i64: 9, 256>}, {pipeline_mode = #tpu.pipeline_mode<synchronous>, transform_indices = @transform_2, window_bounds = array<i64: 9, 16, 8>}, {pipeline_mode = #tpu.pipeline_mode<synchronous>, transform_indices = @transform_3, window_bounds = array<i64: 8, 16>}, {transform_indices = @transform_4, window_bounds = array<i64: 8, 256>}]} {
    %c0 = arith.constant 0 : index
    %c0_0 = arith.constant 0 : index
    %0 = vector.load %arg1[%c0, %c0_0] : memref<8x256xf32, #tpu.memory_space<vmem>>, vector<8x256xf32>
    %cst = arith.constant 0.000000e+00 : f32
    %1 = vector.broadcast %cst : f32 to vector<8x256xf32>
    %2 = arith.maximumf %0, %1 : vector<8x256xf32>
    %c0_1 = arith.constant 0 : index
    %c0_2 = arith.constant 0 : index
    %3 = vector.load %arg2[%c0_1, %c0_2] : memref<9x256xf32, #tpu.memory_space<vmem>>, vector<9x256xf32>
    %c17_i32 = arith.constant 17 : i32
    %4 = tpu.dynamic_rotate %2 by %c17_i32 dim 1 : vector<8x256xf32>, i32 -> vector<8x256xf32>
    %5 = vector.extract_strided_slice %3 {offsets = [0, 0], sizes = [1, 256], strides = [1, 1]} : vector<9x256xf32> to vector<1x256xf32>
    %6 = vector.broadcast %5 : vector<1x256xf32> to vector<8x256xf32>
    %7 = arith.mulf %4, %6 : vector<8x256xf32>
    %c0_3 = arith.constant 0 : index
    %c0_4 = arith.constant 0 : index
    %c0_5 = arith.constant 0 : index
    %8 = vector.load %arg3[%c0_3, %c0_4, %c0_5] : memref<9x16x8xf32, #tpu.memory_space<vmem>>, vector<1x16x8xf32>
    %9 = vector.shape_cast %8 : vector<1x16x8xf32> to vector<16x8xf32>
    %cst_6 = arith.constant dense<0.000000e+00> : vector<16x256xf32>
    %10 = tpu.matmul %9, %7, %cst_6 {dimension_numbers = #tpu.dot_dimension_numbers<[1], [0], [0], [1], [0, 0, 1, 1], [], []>} : vector<16x8xf32>, vector<8x256xf32>, vector<16x256xf32> -> vector<16x256xf32>
    %c16_i32 = arith.constant 16 : i32
    %11 = tpu.dynamic_rotate %2 by %c16_i32 dim 1 : vector<8x256xf32>, i32 -> vector<8x256xf32>
    %12 = vector.extract_strided_slice %3 {offsets = [1, 0], sizes = [1, 256], strides = [1, 1]} : vector<9x256xf32> to vector<1x256xf32>
    %13 = vector.broadcast %12 : vector<1x256xf32> to vector<8x256xf32>
    %14 = arith.mulf %11, %13 : vector<8x256xf32>
    %c1 = arith.constant 1 : index
    %c0_7 = arith.constant 0 : index
    %c0_8 = arith.constant 0 : index
    %15 = vector.load %arg3[%c1, %c0_7, %c0_8] : memref<9x16x8xf32, #tpu.memory_space<vmem>>, vector<1x16x8xf32>
    %16 = vector.shape_cast %15 : vector<1x16x8xf32> to vector<16x8xf32>
    %cst_9 = arith.constant dense<0.000000e+00> : vector<16x256xf32>
    %17 = tpu.matmul %16, %14, %cst_9 {dimension_numbers = #tpu.dot_dimension_numbers<[1], [0], [0], [1], [0, 0, 1, 1], [], []>} : vector<16x8xf32>, vector<8x256xf32>, vector<16x256xf32> -> vector<16x256xf32>
    %18 = arith.addf %10, %17 : vector<16x256xf32>
    %c15_i32 = arith.constant 15 : i32
    %19 = tpu.dynamic_rotate %2 by %c15_i32 dim 1 : vector<8x256xf32>, i32 -> vector<8x256xf32>
    %20 = vector.extract_strided_slice %3 {offsets = [2, 0], sizes = [1, 256], strides = [1, 1]} : vector<9x256xf32> to vector<1x256xf32>
    %21 = vector.broadcast %20 : vector<1x256xf32> to vector<8x256xf32>
    %22 = arith.mulf %19, %21 : vector<8x256xf32>
    %c2 = arith.constant 2 : index
    %c0_10 = arith.constant 0 : index
    %c0_11 = arith.constant 0 : index
    %23 = vector.load %arg3[%c2, %c0_10, %c0_11] : memref<9x16x8xf32, #tpu.memory_space<vmem>>, vector<1x16x8xf32>
    %24 = vector.shape_cast %23 : vector<1x16x8xf32> to vector<16x8xf32>
    %cst_12 = arith.constant dense<0.000000e+00> : vector<16x256xf32>
    %25 = tpu.matmul %24, %22, %cst_12 {dimension_numbers = #tpu.dot_dimension_numbers<[1], [0], [0], [1], [0, 0, 1, 1], [], []>} : vector<16x8xf32>, vector<8x256xf32>, vector<16x256xf32> -> vector<16x256xf32>
    %26 = arith.addf %18, %25 : vector<16x256xf32>
    %c1_i32 = arith.constant 1 : i32
    %27 = tpu.dynamic_rotate %2 by %c1_i32 dim 1 : vector<8x256xf32>, i32 -> vector<8x256xf32>
    %28 = vector.extract_strided_slice %3 {offsets = [3, 0], sizes = [1, 256], strides = [1, 1]} : vector<9x256xf32> to vector<1x256xf32>
    %29 = vector.broadcast %28 : vector<1x256xf32> to vector<8x256xf32>
    %30 = arith.mulf %27, %29 : vector<8x256xf32>
    %c3 = arith.constant 3 : index
    %c0_13 = arith.constant 0 : index
    %c0_14 = arith.constant 0 : index
    %31 = vector.load %arg3[%c3, %c0_13, %c0_14] : memref<9x16x8xf32, #tpu.memory_space<vmem>>, vector<1x16x8xf32>
    %32 = vector.shape_cast %31 : vector<1x16x8xf32> to vector<16x8xf32>
    %cst_15 = arith.constant dense<0.000000e+00> : vector<16x256xf32>
    %33 = tpu.matmul %32, %30, %cst_15 {dimension_numbers = #tpu.dot_dimension_numbers<[1], [0], [0], [1], [0, 0, 1, 1], [], []>} : vector<16x8xf32>, vector<8x256xf32>, vector<16x256xf32> -> vector<16x256xf32>
    %34 = arith.addf %26, %33 : vector<16x256xf32>
    %c4 = arith.constant 4 : index
    %c0_16 = arith.constant 0 : index
    %c0_17 = arith.constant 0 : index
    %35 = vector.load %arg3[%c4, %c0_16, %c0_17] : memref<9x16x8xf32, #tpu.memory_space<vmem>>, vector<1x16x8xf32>
    %36 = vector.shape_cast %35 : vector<1x16x8xf32> to vector<16x8xf32>
    %cst_18 = arith.constant dense<0.000000e+00> : vector<16x256xf32>
    %37 = tpu.matmul %36, %2, %cst_18 {dimension_numbers = #tpu.dot_dimension_numbers<[1], [0], [0], [1], [0, 0, 1, 1], [], []>} : vector<16x8xf32>, vector<8x256xf32>, vector<16x256xf32> -> vector<16x256xf32>
    %38 = arith.addf %34, %37 : vector<16x256xf32>
    %c255_i32 = arith.constant 255 : i32
    %39 = tpu.dynamic_rotate %2 by %c255_i32 dim 1 : vector<8x256xf32>, i32 -> vector<8x256xf32>
    %40 = vector.extract_strided_slice %3 {offsets = [5, 0], sizes = [1, 256], strides = [1, 1]} : vector<9x256xf32> to vector<1x256xf32>
    %41 = vector.broadcast %40 : vector<1x256xf32> to vector<8x256xf32>
    %42 = arith.mulf %39, %41 : vector<8x256xf32>
    %c5 = arith.constant 5 : index
    %c0_19 = arith.constant 0 : index
    %c0_20 = arith.constant 0 : index
    %43 = vector.load %arg3[%c5, %c0_19, %c0_20] : memref<9x16x8xf32, #tpu.memory_space<vmem>>, vector<1x16x8xf32>
    %44 = vector.shape_cast %43 : vector<1x16x8xf32> to vector<16x8xf32>
    %cst_21 = arith.constant dense<0.000000e+00> : vector<16x256xf32>
    %45 = tpu.matmul %44, %42, %cst_21 {dimension_numbers = #tpu.dot_dimension_numbers<[1], [0], [0], [1], [0, 0, 1, 1], [], []>} : vector<16x8xf32>, vector<8x256xf32>, vector<16x256xf32> -> vector<16x256xf32>
    %46 = arith.addf %38, %45 : vector<16x256xf32>
    %c241_i32 = arith.constant 241 : i32
    %47 = tpu.dynamic_rotate %2 by %c241_i32 dim 1 : vector<8x256xf32>, i32 -> vector<8x256xf32>
    %48 = vector.extract_strided_slice %3 {offsets = [6, 0], sizes = [1, 256], strides = [1, 1]} : vector<9x256xf32> to vector<1x256xf32>
    %49 = vector.broadcast %48 : vector<1x256xf32> to vector<8x256xf32>
    %50 = arith.mulf %47, %49 : vector<8x256xf32>
    %c6 = arith.constant 6 : index
    %c0_22 = arith.constant 0 : index
    %c0_23 = arith.constant 0 : index
    %51 = vector.load %arg3[%c6, %c0_22, %c0_23] : memref<9x16x8xf32, #tpu.memory_space<vmem>>, vector<1x16x8xf32>
    %52 = vector.shape_cast %51 : vector<1x16x8xf32> to vector<16x8xf32>
    %cst_24 = arith.constant dense<0.000000e+00> : vector<16x256xf32>
    %53 = tpu.matmul %52, %50, %cst_24 {dimension_numbers = #tpu.dot_dimension_numbers<[1], [0], [0], [1], [0, 0, 1, 1], [], []>} : vector<16x8xf32>, vector<8x256xf32>, vector<16x256xf32> -> vector<16x256xf32>
    %54 = arith.addf %46, %53 : vector<16x256xf32>
    %c240_i32 = arith.constant 240 : i32
    %55 = tpu.dynamic_rotate %2 by %c240_i32 dim 1 : vector<8x256xf32>, i32 -> vector<8x256xf32>
    %56 = vector.extract_strided_slice %3 {offsets = [7, 0], sizes = [1, 256], strides = [1, 1]} : vector<9x256xf32> to vector<1x256xf32>
    %57 = vector.broadcast %56 : vector<1x256xf32> to vector<8x256xf32>
    %58 = arith.mulf %55, %57 : vector<8x256xf32>
    %c7 = arith.constant 7 : index
    %c0_25 = arith.constant 0 : index
    %c0_26 = arith.constant 0 : index
    %59 = vector.load %arg3[%c7, %c0_25, %c0_26] : memref<9x16x8xf32, #tpu.memory_space<vmem>>, vector<1x16x8xf32>
    %60 = vector.shape_cast %59 : vector<1x16x8xf32> to vector<16x8xf32>
    %cst_27 = arith.constant dense<0.000000e+00> : vector<16x256xf32>
    %61 = tpu.matmul %60, %58, %cst_27 {dimension_numbers = #tpu.dot_dimension_numbers<[1], [0], [0], [1], [0, 0, 1, 1], [], []>} : vector<16x8xf32>, vector<8x256xf32>, vector<16x256xf32> -> vector<16x256xf32>
    %62 = arith.addf %54, %61 : vector<16x256xf32>
    %c239_i32 = arith.constant 239 : i32
    %63 = tpu.dynamic_rotate %2 by %c239_i32 dim 1 : vector<8x256xf32>, i32 -> vector<8x256xf32>
    %64 = vector.extract_strided_slice %3 {offsets = [8, 0], sizes = [1, 256], strides = [1, 1]} : vector<9x256xf32> to vector<1x256xf32>
    %65 = vector.broadcast %64 : vector<1x256xf32> to vector<8x256xf32>
    %66 = arith.mulf %63, %65 : vector<8x256xf32>
    %c8 = arith.constant 8 : index
    %c0_28 = arith.constant 0 : index
    %c0_29 = arith.constant 0 : index
    %67 = vector.load %arg3[%c8, %c0_28, %c0_29] : memref<9x16x8xf32, #tpu.memory_space<vmem>>, vector<1x16x8xf32>
    %68 = vector.shape_cast %67 : vector<1x16x8xf32> to vector<16x8xf32>
    %cst_30 = arith.constant dense<0.000000e+00> : vector<16x256xf32>
    %69 = tpu.matmul %68, %66, %cst_30 {dimension_numbers = #tpu.dot_dimension_numbers<[1], [0], [0], [1], [0, 0, 1, 1], [], []>} : vector<16x8xf32>, vector<8x256xf32>, vector<16x256xf32> -> vector<16x256xf32>
    %70 = arith.addf %62, %69 : vector<16x256xf32>
    %cst_31 = arith.constant 0.000000e+00 : f32
    %71 = vector.broadcast %cst_31 : f32 to vector<16x256xf32>
    %72 = arith.maximumf %70, %71 : vector<16x256xf32>
    %c0_32 = arith.constant 0 : index
    %c0_33 = arith.constant 0 : index
    %73 = vector.load %arg4[%c0_32, %c0_33] : memref<8x16xf32, #tpu.memory_space<vmem>>, vector<8x16xf32>
    %cst_34 = arith.constant dense<0.000000e+00> : vector<8x256xf32>
    %74 = tpu.matmul %73, %72, %cst_34 {dimension_numbers = #tpu.dot_dimension_numbers<[1], [0], [0], [1], [0, 0, 1, 1], [], []>} : vector<8x16xf32>, vector<16x256xf32>, vector<8x256xf32> -> vector<8x256xf32>
    %75 = arith.addf %0, %74 : vector<8x256xf32>
    %c0_35 = arith.constant 0 : index
    %c0_36 = arith.constant 0 : index
    %76 = vector.load %arg5[%c0_35, %c0_36] : memref<8x256xf32, #tpu.memory_space<vmem>>, vector<8x256xf32>
    tpu.vector_store %arg5[%c0_35, %c0_36], %75 {strides = array<i32>} : memref<8x256xf32, #tpu.memory_space<vmem>>, vector<8x256xf32>,
    return
  }
  func.func @transform_0(%arg0: i32) -> (i32, i32) {
    %c0_i32 = arith.constant 0 : i32
    %c0_i32_0 = arith.constant 0 : i32
    return %arg0, %c0_i32 : i32, i32
  }
  func.func @transform_1(%arg0: i32) -> (i32, i32) {
    %c0_i32 = arith.constant 0 : i32
    %c0_i32_0 = arith.constant 0 : i32
    %c0_i32_1 = arith.constant 0 : i32
    return %c0_i32, %c0_i32_0 : i32, i32
  }
  func.func @transform_2(%arg0: i32) -> (i32, i32, i32) {
    %c0_i32 = arith.constant 0 : i32
    %c0_i32_0 = arith.constant 0 : i32
    %c0_i32_1 = arith.constant 0 : i32
    %c0_i32_2 = arith.constant 0 : i32
    return %c0_i32, %c0_i32_0, %c0_i32_1 : i32, i32, i32
  }
  func.func @transform_3(%arg0: i32) -> (i32, i32) {
    %c0_i32 = arith.constant 0 : i32
    %c0_i32_0 = arith.constant 0 : i32
    %c0_i32_1 = arith.constant 0 : i32
    return %c0_i32, %c0_i32_0 : i32, i32
  }
  func.func @transform_4(%arg0: i32) -> (i32, i32) {
    %c0_i32 = arith.constant 0 : i32
    %c0_i32_0 = arith.constant 0 : i32
    return %arg0, %c0_i32 : i32, i32
  }
}

</mosaic_0001>

<llo_original>
// kernel: tpu_custom_call.1
$region0: #{tpu_custom_call.1}
  #allocation0 [shape = 'u32[]', space=smem, size = 0x4, offset = 0x4, fixed_abs, tag = 'smem constant byte address 0x4 - core index']
  #allocation1 [shape = 'u32[72,128]{1,0:T(1,128)}', space=vmem, size = 0x9000, scoped, tag = 'internal scratch']
  %s0 = inlined_call_operand.vmem [shape: f32[8,256], index: 0, kind: input, shape index: {}]
  %s1 = inlined_call_operand.vmem [shape: f32[9,256], index: 1, kind: input, shape index: {}]
  %s2 = inlined_call_operand.vmem [shape: f32[9,16,8], index: 2, kind: input, shape index: {}]
  %s3 = inlined_call_operand.vmem [shape: f32[8,16], index: 3, kind: input, shape index: {}]
  %s4 = inlined_call_operand.hbm [shape: f32[8,256], index: 4, kind: output, shape index: {}]
  %s5 = sld [smem:[#allocation0]]
  $region26: #{tpu_custom_call.1} parent=0
    _
  %s7 = ssub.s32 1, %s5
  %s8 = scalar_select 0, %s7, %s5
  $region1: #{tpu_custom_call.1} parent=0
    #allocation2 [shape = 'u8[8192]{0}', space=vmem, size = 0x2000, scoped, tag = 'output window, operand 0, single buffered']
    #allocation3 [shape = 's32[1]{0}', space=sflag, size = 0x4, scoped, tag = 'scoped memory for tpu_custom_call.1']
    %9 = vsyncpa [#allocation3], 0
    // Predicated region
    $region2: #{tpu_custom_call.1} parent=1 // pred_check
      _
    $region3: #{tpu_custom_call.1} parent=1 // pred_check_branch
      %11 = sbr.rel (0) target = $region5
    $region4: #{tpu_custom_call.1} parent=1 // pred_region
      _
    $region5: #{tpu_custom_call.1} parent=1 // pred_fallthru
      _
    // Predicated region
    $region6: #{tpu_custom_call.1} parent=1 // pred_check
      _
    $region7: #{tpu_custom_call.1} parent=1 // pred_check_branch
      %13 = sbr.rel (0) target = $region9
    $region8: #{tpu_custom_call.1} parent=1 // pred_region
      _
    $region9: #{tpu_custom_call.1} parent=1 // pred_fallthru
      _
    // Predicated region
    $region10: #{tpu_custom_call.1} parent=1 // pred_check
      _
    $region11: #{tpu_custom_call.1} parent=1 // pred_check_branch
      %15 = sbr.rel (0) target = $region13
    $region12: #{tpu_custom_call.1} parent=1 // pred_region
      _
    $region13: #{tpu_custom_call.1} parent=1 // pred_fallthru
      _
    // Predicated region
    $region14: #{tpu_custom_call.1} parent=1 // pred_check
      _
    $region15: #{tpu_custom_call.1} parent=1 // pred_check_branch
      %17 = sbr.rel (0) target = $region17
    $region16: #{tpu_custom_call.1} parent=1 // pred_region
      _
    $region17: #{tpu_custom_call.1} parent=1 // pred_fallthru
      _
    %v18 = vld [vmem:[%s0] sm:$0xff]
    %v19 = vld [vmem:[%s0 + $0x8] sm:$0xff]
    %v20 = vmax.f32 %v18, 0.0
    %v21 = vmax.f32 %v19, 0.0
    %v22 = vld [vmem:[%s1] sm:$0xff]
    %v23 = vld [vmem:[%s1 + $0x8] sm:$0xff]
    %v24 = vld [vmem:[%s1 + $0x10] sm:$0x1]
    %v25 = vld [vmem:[%s1 + $0x18] sm:$0x1]
    %26 = vrot.lane.b32.xlu0 %v20, 17
    %v27 = vpop.permute.xlu0 %26
    %28 = vrot.lane.b32.xlu0 %v21, 17
    %v29 = vpop.permute.xlu0 %28
    %v30 = vlaneseq
    %v31 = vand.u32 %v30, 127
    %vm32 = vcmp.lt.s32.totalorder %v31, 17
    %v33 = vsel %vm32, %v27, %v29
    %v34 = vsel %vm32, %v29, %v27
    %v35 = vperm.slane %v22, 0
    %v36 = vperm.slane %v23, 0
    %v37 = vmul.f32 %v34, %v35
    %v38 = vmul.f32 %v33, %v36
    %v39 = vld [vmem:[%s2] sm:$0xff]
    %v40 = vld [vmem:[%s2 + $0x8] sm:$0xff]
    %41 = vrot.lane.b32.xlu0 %v20, 16
    %v42 = vpop.permute.xlu0 %41
    %43 = vrot.lane.b32.xlu0 %v21, 16
    %v44 = vpop.permute.xlu0 %43
    %vm45 = vcmp.lt.s32.totalorder %v31, 16
    %v46 = vsel %vm45, %v42, %v44
    %v47 = vsel %vm45, %v44, %v42
    %v48 = vperm.slane %v22, 1
    %v49 = vperm.slane %v23, 1
    %v50 = vmul.f32 %v47, %v48
    %v51 = vmul.f32 %v46, %v49
    %s52 = scalar_lea.vmem %s2, 16
    %v53 = vld [vmem:[%s52] sm:$0xff]
    %v54 = vld [vmem:[%s52 + $0x8] sm:$0xff]
    %vm55 = vcmask 64512
    %v57 = vsel %vm55, %v53, 0
    %v60 = vsel %vm55, %v54, 0
    %62 = vmatpush.msra.mxu0 0.0
    %63 = vmatpush.msra.mxu0 0.0
    %64 = vmatpush.msra.mxu0 0.0
    %65 = vmatpush.msra.mxu0 0.0
    %66 = vmatpush.msra.mxu0 0.0
    %67 = vmatpush.msra.mxu0 0.0
    %68 = vmatpush.msra.mxu0 0.0
    %69 = vmatpush.msra.mxu0 0.0
    %70 = vmatpush.msra.mxu0 0.0
    %71 = vmatpush.msra.mxu0 0.0
    %72 = vmatpush.msra.mxu0 0.0
    %73 = vmatpush.msra.mxu0 0.0
    %74 = vmatpush.msra.mxu0 0.0
    %75 = vmatpush.msra.mxu0 0.0
    %76 = vmatpush.msra.mxu0 0.0
    %77 = vmatpush.msra.mxu0 %v50
    %78 = vmatmul.f32.gmra.mxu0 %v57
    %v79 = vpop.f32.mrf.mxu0
    %v80 = vadd.f32 0.0, %v79
    %81 = vmatmul.f32.gmra.mxu0 %v60
    %v82 = vpop.f32.mrf.mxu0
    %v83 = vadd.f32 0.0, %v82
    %84 = vdwg.mxu0
    %85 = vmatpush.msra.mxu0 0.0
    %86 = vmatpush.msra.mxu0 0.0
    %87 = vmatpush.msra.mxu0 0.0
    %88 = vmatpush.msra.mxu0 0.0
    %89 = vmatpush.msra.mxu0 0.0
    %90 = vmatpush.msra.mxu0 0.0
    %91 = vmatpush.msra.mxu0 0.0
    %92 = vmatpush.msra.mxu0 0.0
    %93 = vmatpush.msra.mxu0 0.0
    %94 = vmatpush.msra.mxu0 0.0
    %95 = vmatpush.msra.mxu0 0.0
    %96 = vmatpush.msra.mxu0 0.0
    %97 = vmatpush.msra.mxu0 0.0
    %98 = vmatpush.msra.mxu0 0.0
    %99 = vmatpush.msra.mxu0 0.0
    %100 = vmatpush.msra.mxu0 %v51
    %101 = vmatmul.f32.gmra.mxu0 %v57
    %v102 = vpop.f32.mrf.mxu0
    %v103 = vadd.f32 0.0, %v102
    %104 = vmatmul.f32.gmra.mxu0 %v60
    %v105 = vpop.f32.mrf.mxu0
    %v106 = vadd.f32 0.0, %v105
    %107 = vdwg.mxu0
    %v109 = vsel %vm55, %v39, 0
    %v112 = vsel %vm55, %v40, 0
    %114 = vmatpush.msra.mxu0 0.0
    %115 = vmatpush.msra.mxu0 0.0
    %116 = vmatpush.msra.mxu0 0.0
    %117 = vmatpush.msra.mxu0 0.0
    %118 = vmatpush.msra.mxu0 0.0
    %119 = vmatpush.msra.mxu0 0.0
    %120 = vmatpush.msra.mxu0 0.0
    %121 = vmatpush.msra.mxu0 0.0
    %122 = vmatpush.msra.mxu0 0.0
    %123 = vmatpush.msra.mxu0 0.0
    %124 = vmatpush.msra.mxu0 0.0
    %125 = vmatpush.msra.mxu0 0.0
    %126 = vmatpush.msra.mxu0 0.0
    %127 = vmatpush.msra.mxu0 0.0
    %128 = vmatpush.msra.mxu0 0.0
    %129 = vmatpush.msra.mxu0 %v37
    %130 = vmatmul.f32.gmra.mxu0 %v109
    %v131 = vpop.f32.mrf.mxu0
    %v132 = vadd.f32 %v80, %v131
    %133 = vmatmul.f32.gmra.mxu0 %v112
    %v134 = vpop.f32.mrf.mxu0
    %v135 = vadd.f32 %v83, %v134
    %136 = vdwg.mxu0
    %137 = vmatpush.msra.mxu0 0.0
    %138 = vmatpush.msra.mxu0 0.0
    %139 = vmatpush.msra.mxu0 0.0
    %140 = vmatpush.msra.mxu0 0.0
    %141 = vmatpush.msra.mxu0 0.0
    %142 = vmatpush.msra.mxu0 0.0
    %143 = vmatpush.msra.mxu0 0.0
    %144 = vmatpush.msra.mxu0 0.0
    %145 = vmatpush.msra.mxu0 0.0
    %146 = vmatpush.msra.mxu0 0.0
    %147 = vmatpush.msra.mxu0 0.0
    %148 = vmatpush.msra.mxu0 0.0
    %149 = vmatpush.msra.mxu0 0.0
    %150 = vmatpush.msra.mxu0 0.0
    %151 = vmatpush.msra.mxu0 0.0
    %152 = vmatpush.msra.mxu0 %v38
    %153 = vmatmul.f32.gmra.mxu0 %v109
    %v154 = vpop.f32.mrf.mxu0
    %v155 = vadd.f32 %v103, %v154
    %156 = vmatmul.f32.gmra.mxu0 %v112
    %v157 = vpop.f32.mrf.mxu0
    %v158 = vadd.f32 %v106, %v157
    %159 = vdwg.mxu0
    %160 = vrot.lane.b32.xlu0 %v20, 15
    %v161 = vpop.permute.xlu0 %160
    %162 = vrot.lane.b32.xlu0 %v21, 15
    %v163 = vpop.permute.xlu0 %162
    %vm164 = vcmp.lt.s32.totalorder %v31, 15
    %v165 = vsel %vm164, %v161, %v163
    %v166 = vsel %vm164, %v163, %v161
    %v167 = vperm.slane %v22, 2
    %v168 = vperm.slane %v23, 2
    %v169 = vmul.f32 %v166, %v167
    %v170 = vmul.f32 %v165, %v168
    %s171 = scalar_lea.vmem %s2, 32
    %v172 = vld [vmem:[%s171] sm:$0xff]
    %v173 = vld [vmem:[%s171 + $0x8] sm:$0xff]
    %v175 = vsel %vm55, %v172, 0
    %v178 = vsel %vm55, %v173, 0
    %180 = vmatpush.msra.mxu0 0.0
    %181 = vmatpush.msra.mxu0 0.0
    %182 = vmatpush.msra.mxu0 0.0
    %183 = vmatpush.msra.mxu0 0.0
    %184 = vmatpush.msra.mxu0 0.0
    %185 = vmatpush.msra.mxu0 0.0
    %186 = vmatpush.msra.mxu0 0.0
    %187 = vmatpush.msra.mxu0 0.0
    %188 = vmatpush.msra.mxu0 0.0
    %189 = vmatpush.msra.mxu0 0.0
    %190 = vmatpush.msra.mxu0 0.0
    %191 = vmatpush.msra.mxu0 0.0
    %192 = vmatpush.msra.mxu0 0.0
    %193 = vmatpush.msra.mxu0 0.0
    %194 = vmatpush.msra.mxu0 0.0
    %195 = vmatpush.msra.mxu0 %v169
    %196 = vmatmul.f32.gmra.mxu0 %v175
    %v197 = vpop.f32.mrf.mxu0
    %v198 = vadd.f32 0.0, %v197
    %199 = vmatmul.f32.gmra.mxu0 %v178
    %v200 = vpop.f32.mrf.mxu0
    %v201 = vadd.f32 0.0, %v200
    %202 = vdwg.mxu0
    %203 = vmatpush.msra.mxu0 0.0
    %204 = vmatpush.msra.mxu0 0.0
    %205 = vmatpush.msra.mxu0 0.0
    %206 = vmatpush.msra.mxu0 0.0
    %207 = vmatpush.msra.mxu0 0.0
    %208 = vmatpush.msra.mxu0 0.0
    %209 = vmatpush.msra.mxu0 0.0
    %210 = vmatpush.msra.mxu0 0.0
    %211 = vmatpush.msra.mxu0 0.0
    %212 = vmatpush.msra.mxu0 0.0
    %213 = vmatpush.msra.mxu0 0.0
    %214 = vmatpush.msra.mxu0 0.0
    %215 = vmatpush.msra.mxu0 0.0
    %216 = vmatpush.msra.mxu0 0.0
    %217 = vmatpush.msra.mxu0 0.0
    %218 = vmatpush.msra.mxu0 %v170
    %219 = vmatmul.f32.gmra.mxu0 %v175
    %v220 = vpop.f32.mrf.mxu0
    %v221 = vadd.f32 0.0, %v220
    %222 = vmatmul.f32.gmra.mxu0 %v178
    %v223 = vpop.f32.mrf.mxu0
    %v224 = vadd.f32 0.0, %v223
    %225 = vdwg.mxu0
    %v226 = vadd.f32 %v132, %v198
    %v227 = vadd.f32 %v155, %v221
    %v228 = vadd.f32 %v135, %v201
    %v229 = vadd.f32 %v158, %v224
    %230 = vrot.lane.b32.xlu0 %v20, 1
    %v231 = vpop.permute.xlu0 %230
    %232 = vrot.lane.b32.xlu0 %v21, 1
    %v233 = vpop.permute.xlu0 %232
    %vm234 = vcmp.lt.s32.totalorder %v31, 1
    %v235 = vsel %vm234, %v231, %v233
    %v236 = vsel %vm234, %v233, %v231
    %v237 = vperm.slane %v22, 3
    %v238 = vperm.slane %v23, 3
    %v239 = vmul.f32 %v236, %v237
    %v240 = vmul.f32 %v235, %v238
    %s241 = scalar_lea.vmem %s2, 48
    %v242 = vld [vmem:[%s241] sm:$0xff]
    %v243 = vld [vmem:[%s241 + $0x8] sm:$0xff]
    %v245 = vsel %vm55, %v242, 0
    %v248 = vsel %vm55, %v243, 0
    %250 = vmatpush.msra.mxu0 0.0
    %251 = vmatpush.msra.mxu0 0.0
    %252 = vmatpush.msra.mxu0 0.0
    %253 = vmatpush.msra.mxu0 0.0
    %254 = vmatpush.msra.mxu0 0.0
    %255 = vmatpush.msra.mxu0 0.0
    %256 = vmatpush.msra.mxu0 0.0
    %257 = vmatpush.msra.mxu0 0.0
    %258 = vmatpush.msra.mxu0 0.0
    %259 = vmatpush.msra.mxu0 0.0
    %260 = vmatpush.msra.mxu0 0.0
    %261 = vmatpush.msra.mxu0 0.0
    %262 = vmatpush.msra.mxu0 0.0
    %263 = vmatpush.msra.mxu0 0.0
    %264 = vmatpush.msra.mxu0 0.0
    %265 = vmatpush.msra.mxu0 %v239
    %266 = vmatmul.f32.gmra.mxu0 %v245
    %v267 = vpop.f32.mrf.mxu0
    %v268 = vadd.f32 0.0, %v267
    %269 = vmatmul.f32.gmra.mxu0 %v248
    %v270 = vpop.f32.mrf.mxu0
    %v271 = vadd.f32 0.0, %v270
    %272 = vdwg.mxu0
    %273 = vmatpush.msra.mxu0 0.0
    %274 = vmatpush.msra.mxu0 0.0
    %275 = vmatpush.msra.mxu0 0.0
    %276 = vmatpush.msra.mxu0 0.0
    %277 = vmatpush.msra.mxu0 0.0
    %278 = vmatpush.msra.mxu0 0.0
    %279 = vmatpush.msra.mxu0 0.0
    %280 = vmatpush.msra.mxu0 0.0
    %281 = vmatpush.msra.mxu0 0.0
    %282 = vmatpush.msra.mxu0 0.0
    %283 = vmatpush.msra.mxu0 0.0
    %284 = vmatpush.msra.mxu0 0.0
    %285 = vmatpush.msra.mxu0 0.0
    %286 = vmatpush.msra.mxu0 0.0
    %287 = vmatpush.msra.mxu0 0.0
    %288 = vmatpush.msra.mxu0 %v240
    %289 = vmatmul.f32.gmra.mxu0 %v245
    %v290 = vpop.f32.mrf.mxu0
    %v291 = vadd.f32 0.0, %v290
    %292 = vmatmul.f32.gmra.mxu0 %v248
    %v293 = vpop.f32.mrf.mxu0
    %v294 = vadd.f32 0.0, %v293
    %295 = vdwg.mxu0
    %v296 = vadd.f32 %v226, %v268
    %v297 = vadd.f32 %v227, %v291
    %v298 = vadd.f32 %v228, %v271
    %v299 = vadd.f32 %v229, %v294
    %s300 = scalar_lea.vmem %s2, 64
    %v301 = vld [vmem:[%s300] sm:$0xff]
    %v302 = vld [vmem:[%s300 + $0x8] sm:$0xff]
    %v304 = vsel %vm55, %v301, 0
    %v307 = vsel %vm55, %v302, 0
    %309 = vmatpush.msra.mxu0 0.0
    %310 = vmatpush.msra.mxu0 0.0
    %311 = vmatpush.msra.mxu0 0.0
    %312 = vmatpush.msra.mxu0 0.0
    %313 = vmatpush.msra.mxu0 0.0
    %314 = vmatpush.msra.mxu0 0.0
    %315 = vmatpush.msra.mxu0 0.0
    %316 = vmatpush.msra.mxu0 0.0
    %317 = vmatpush.msra.mxu0 0.0
    %318 = vmatpush.msra.mxu0 0.0
    %319 = vmatpush.msra.mxu0 0.0
    %320 = vmatpush.msra.mxu0 0.0
    %321 = vmatpush.msra.mxu0 0.0
    %322 = vmatpush.msra.mxu0 0.0
    %323 = vmatpush.msra.mxu0 0.0
    %324 = vmatpush.msra.mxu0 %v20
    %325 = vmatmul.f32.gmra.mxu0 %v304
    %v326 = vpop.f32.mrf.mxu0
    %v327 = vadd.f32 0.0, %v326
    %328 = vmatmul.f32.gmra.mxu0 %v307
    %v329 = vpop.f32.mrf.mxu0
    %v330 = vadd.f32 0.0, %v329
    %331 = vdwg.mxu0
    %332 = vmatpush.msra.mxu0 0.0
    %333 = vmatpush.msra.mxu0 0.0
    %334 = vmatpush.msra.mxu0 0.0
    %335 = vmatpush.msra.mxu0 0.0
    %336 = vmatpush.msra.mxu0 0.0
    %337 = vmatpush.msra.mxu0 0.0
    %338 = vmatpush.msra.mxu0 0.0
    %339 = vmatpush.msra.mxu0 0.0
    %340 = vmatpush.msra.mxu0 0.0
    %341 = vmatpush.msra.mxu0 0.0
    %342 = vmatpush.msra.mxu0 0.0
    %343 = vmatpush.msra.mxu0 0.0
    %344 = vmatpush.msra.mxu0 0.0
    %345 = vmatpush.msra.mxu0 0.0
    %346 = vmatpush.msra.mxu0 0.0
    %347 = vmatpush.msra.mxu0 %v21
    %348 = vmatmul.f32.gmra.mxu0 %v304
    %v349 = vpop.f32.mrf.mxu0
    %v350 = vadd.f32 0.0, %v349
    %351 = vmatmul.f32.gmra.mxu0 %v307
    %v352 = vpop.f32.mrf.mxu0
    %v353 = vadd.f32 0.0, %v352
    %354 = vdwg.mxu0
    %v355 = vadd.f32 %v296, %v327
    %v356 = vadd.f32 %v297, %v350
    %v357 = vadd.f32 %v298, %v330
    %v358 = vadd.f32 %v299, %v353
    %359 = vrot.lane.b32.xlu0 %v20, 127
    %v360 = vpop.permute.xlu0 %359
    %361 = vrot.lane.b32.xlu0 %v21, 127
    %v362 = vpop.permute.xlu0 %361
    %vm363 = vcmp.lt.s32.totalorder %v31, 127
    %v364 = vsel %vm363, %v360, %v362
    %v365 = vsel %vm363, %v362, %v360
    %v366 = vperm.slane %v22, 5
    %v367 = vperm.slane %v23, 5
    %v368 = vmul.f32 %v364, %v366
    %v369 = vmul.f32 %v365, %v367
    %s370 = scalar_lea.vmem %s2, 80
    %v371 = vld [vmem:[%s370] sm:$0xff]
    %v372 = vld [vmem:[%s370 + $0x8] sm:$0xff]
    %v374 = vsel %vm55, %v371, 0
    %v377 = vsel %vm55, %v372, 0
    %379 = vmatpush.msra.mxu0 0.0
    %380 = vmatpush.msra.mxu0 0.0
    %381 = vmatpush.msra.mxu0 0.0
    %382 = vmatpush.msra.mxu0 0.0
    %383 = vmatpush.msra.mxu0 0.0
    %384 = vmatpush.msra.mxu0 0.0
    %385 = vmatpush.msra.mxu0 0.0
    %386 = vmatpush.msra.mxu0 0.0
    %387 = vmatpush.msra.mxu0 0.0
    %388 = vmatpush.msra.mxu0 0.0
    %389 = vmatpush.msra.mxu0 0.0
    %390 = vmatpush.msra.mxu0 0.0
    %391 = vmatpush.msra.mxu0 0.0
    %392 = vmatpush.msra.mxu0 0.0
    %393 = vmatpush.msra.mxu0 0.0
    %394 = vmatpush.msra.mxu0 %v368
    %395 = vmatmul.f32.gmra.mxu0 %v374
    %v396 = vpop.f32.mrf.mxu0
    %v397 = vadd.f32 0.0, %v396
    %398 = vmatmul.f32.gmra.mxu0 %v377
    %v399 = vpop.f32.mrf.mxu0
    %v400 = vadd.f32 0.0, %v399
    %401 = vdwg.mxu0
    %402 = vmatpush.msra.mxu0 0.0
    %403 = vmatpush.msra.mxu0 0.0
    %404 = vmatpush.msra.mxu0 0.0
    %405 = vmatpush.msra.mxu0 0.0
    %406 = vmatpush.msra.mxu0 0.0
    %407 = vmatpush.msra.mxu0 0.0
    %408 = vmatpush.msra.mxu0 0.0
    %409 = vmatpush.msra.mxu0 0.0
    %410 = vmatpush.msra.mxu0 0.0
    %411 = vmatpush.msra.mxu0 0.0
    %412 = vmatpush.msra.mxu0 0.0
    %413 = vmatpush.msra.mxu0 0.0
    %414 = vmatpush.msra.mxu0 0.0
    %415 = vmatpush.msra.mxu0 0.0
    %416 = vmatpush.msra.mxu0 0.0
    %417 = vmatpush.msra.mxu0 %v369
    %418 = vmatmul.f32.gmra.mxu0 %v374
    %v419 = vpop.f32.mrf.mxu0
    %v420 = vadd.f32 0.0, %v419
    %421 = vmatmul.f32.gmra.mxu0 %v377
    %v422 = vpop.f32.mrf.mxu0
    %v423 = vadd.f32 0.0, %v422
    %424 = vdwg.mxu0
    %v425 = vadd.f32 %v355, %v397
    %v426 = vadd.f32 %v356, %v420
    %v427 = vadd.f32 %v357, %v400
    %v428 = vadd.f32 %v358, %v423
    %429 = vrot.lane.b32.xlu0 %v20, 113
    %v430 = vpop.permute.xlu0 %429
    %431 = vrot.lane.b32.xlu0 %v21, 113
    %v432 = vpop.permute.xlu0 %431
    %vm433 = vcmp.lt.s32.totalorder %v31, 113
    %v434 = vsel %vm433, %v430, %v432
    %v435 = vsel %vm433, %v432, %v430
    %v436 = vperm.slane %v22, 6
    %v437 = vperm.slane %v23, 6
    %v438 = vmul.f32 %v434, %v436
    %v439 = vmul.f32 %v435, %v437
    %s440 = scalar_lea.vmem %s2, 96
    %v441 = vld [vmem:[%s440] sm:$0xff]
    %v442 = vld [vmem:[%s440 + $0x8] sm:$0xff]
    %v444 = vsel %vm55, %v441, 0
    %v447 = vsel %vm55, %v442, 0
    %449 = vmatpush.msra.mxu0 0.0
    %450 = vmatpush.msra.mxu0 0.0
    %451 = vmatpush.msra.mxu0 0.0
    %452 = vmatpush.msra.mxu0 0.0
    %453 = vmatpush.msra.mxu0 0.0
    %454 = vmatpush.msra.mxu0 0.0
    %455 = vmatpush.msra.mxu0 0.0
    %456 = vmatpush.msra.mxu0 0.0
    %457 = vmatpush.msra.mxu0 0.0
    %458 = vmatpush.msra.mxu0 0.0
    %459 = vmatpush.msra.mxu0 0.0
    %460 = vmatpush.msra.mxu0 0.0
    %461 = vmatpush.msra.mxu0 0.0
    %462 = vmatpush.msra.mxu0 0.0
    %463 = vmatpush.msra.mxu0 0.0
    %464 = vmatpush.msra.mxu0 %v438
    %465 = vmatmul.f32.gmra.mxu0 %v444
    %v466 = vpop.f32.mrf.mxu0
    %v467 = vadd.f32 0.0, %v466
    %468 = vmatmul.f32.gmra.mxu0 %v447
    %v469 = vpop.f32.mrf.mxu0
    %v470 = vadd.f32 0.0, %v469
    %471 = vdwg.mxu0
    %472 = vmatpush.msra.mxu0 0.0
    %473 = vmatpush.msra.mxu0 0.0
    %474 = vmatpush.msra.mxu0 0.0
    %475 = vmatpush.msra.mxu0 0.0
    %476 = vmatpush.msra.mxu0 0.0
    %477 = vmatpush.msra.mxu0 0.0
    %478 = vmatpush.msra.mxu0 0.0
    %479 = vmatpush.msra.mxu0 0.0
    %480 = vmatpush.msra.mxu0 0.0
    %481 = vmatpush.msra.mxu0 0.0
    %482 = vmatpush.msra.mxu0 0.0
    %483 = vmatpush.msra.mxu0 0.0
    %484 = vmatpush.msra.mxu0 0.0
    %485 = vmatpush.msra.mxu0 0.0
    %486 = vmatpush.msra.mxu0 0.0
    %487 = vmatpush.msra.mxu0 %v439
    %488 = vmatmul.f32.gmra.mxu0 %v444
    %v489 = vpop.f32.mrf.mxu0
    %v490 = vadd.f32 0.0, %v489
    %491 = vmatmul.f32.gmra.mxu0 %v447
    %v492 = vpop.f32.mrf.mxu0
    %v493 = vadd.f32 0.0, %v492
    %494 = vdwg.mxu0
    %v495 = vadd.f32 %v425, %v467
    %v496 = vadd.f32 %v426, %v490
    %v497 = vadd.f32 %v427, %v470
    %v498 = vadd.f32 %v428, %v493
    %499 = vrot.lane.b32.xlu0 %v20, 112
    %v500 = vpop.permute.xlu0 %499
    %501 = vrot.lane.b32.xlu0 %v21, 112
    %v502 = vpop.permute.xlu0 %501
    %vm503 = vcmp.lt.s32.totalorder %v31, 112
    %v504 = vsel %vm503, %v500, %v502
    %v505 = vsel %vm503, %v502, %v500
    %v506 = vperm.slane %v22, 7
    %v507 = vperm.slane %v23, 7
    %v508 = vmul.f32 %v504, %v506
    %v509 = vmul.f32 %v505, %v507
    %s510 = scalar_lea.vmem %s2, 112
    %v511 = vld [vmem:[%s510] sm:$0xff]
    %v512 = vld [vmem:[%s510 + $0x8] sm:$0xff]
    %v514 = vsel %vm55, %v511, 0
    %v517 = vsel %vm55, %v512, 0
    %519 = vmatpush.msra.mxu0 0.0
    %520 = vmatpush.msra.mxu0 0.0
    %521 = vmatpush.msra.mxu0 0.0
    %522 = vmatpush.msra.mxu0 0.0
    %523 = vmatpush.msra.mxu0 0.0
    %524 = vmatpush.msra.mxu0 0.0
    %525 = vmatpush.msra.mxu0 0.0
    %526 = vmatpush.msra.mxu0 0.0
    %527 = vmatpush.msra.mxu0 0.0
    %528 = vmatpush.msra.mxu0 0.0
    %529 = vmatpush.msra.mxu0 0.0
    %530 = vmatpush.msra.mxu0 0.0
    %531 = vmatpush.msra.mxu0 0.0
    %532 = vmatpush.msra.mxu0 0.0
    %533 = vmatpush.msra.mxu0 0.0
    %534 = vmatpush.msra.mxu0 %v508
    %535 = vmatmul.f32.gmra.mxu0 %v514
    %v536 = vpop.f32.mrf.mxu0
    %v537 = vadd.f32 0.0, %v536
    %538 = vmatmul.f32.gmra.mxu0 %v517
    %v539 = vpop.f32.mrf.mxu0
    %v540 = vadd.f32 0.0, %v539
    %541 = vdwg.mxu0
    %542 = vmatpush.msra.mxu0 0.0
    %543 = vmatpush.msra.mxu0 0.0
    %544 = vmatpush.msra.mxu0 0.0
    %545 = vmatpush.msra.mxu0 0.0
    %546 = vmatpush.msra.mxu0 0.0
    %547 = vmatpush.msra.mxu0 0.0
    %548 = vmatpush.msra.mxu0 0.0
    %549 = vmatpush.msra.mxu0 0.0
    %550 = vmatpush.msra.mxu0 0.0
    %551 = vmatpush.msra.mxu0 0.0
    %552 = vmatpush.msra.mxu0 0.0
    %553 = vmatpush.msra.mxu0 0.0
    %554 = vmatpush.msra.mxu0 0.0
    %555 = vmatpush.msra.mxu0 0.0
    %556 = vmatpush.msra.mxu0 0.0
    %557 = vmatpush.msra.mxu0 %v509
    %558 = vmatmul.f32.gmra.mxu0 %v514
    %v559 = vpop.f32.mrf.mxu0
    %v560 = vadd.f32 0.0, %v559
    %561 = vmatmul.f32.gmra.mxu0 %v517
    %v562 = vpop.f32.mrf.mxu0
    %v563 = vadd.f32 0.0, %v562
    %564 = vdwg.mxu0
    %v565 = vadd.f32 %v495, %v537
    %v566 = vadd.f32 %v496, %v560
    %v567 = vadd.f32 %v497, %v540
    %v568 = vadd.f32 %v498, %v563
    %569 = vrot.lane.b32.xlu0 %v20, 111
    %v570 = vpop.permute.xlu0 %569
    %571 = vrot.lane.b32.xlu0 %v21, 111
    %v572 = vpop.permute.xlu0 %571
    %vm573 = vcmp.lt.s32.totalorder %v31, 111
    %v574 = vsel %vm573, %v570, %v572
    %v575 = vsel %vm573, %v572, %v570
    %v576 = vperm.slane %v24, 0
    %v577 = vperm.slane %v25, 0
    %v578 = vmul.f32 %v574, %v576
    %v579 = vmul.f32 %v575, %v577
    %s580 = scalar_lea.vmem %s2, 128
    %v581 = vld [vmem:[%s580] sm:$0xff]
    %v582 = vld [vmem:[%s580 + $0x8] sm:$0xff]
    %v584 = vsel %vm55, %v581, 0
    %v587 = vsel %vm55, %v582, 0
    %589 = vmatpush.msra.mxu0 0.0
    %590 = vmatpush.msra.mxu0 0.0
    %591 = vmatpush.msra.mxu0 0.0
    %592 = vmatpush.msra.mxu0 0.0
    %593 = vmatpush.msra.mxu0 0.0
    %594 = vmatpush.msra.mxu0 0.0
    %595 = vmatpush.msra.mxu0 0.0
    %596 = vmatpush.msra.mxu0 0.0
    %597 = vmatpush.msra.mxu0 0.0
    %598 = vmatpush.msra.mxu0 0.0
    %599 = vmatpush.msra.mxu0 0.0
    %600 = vmatpush.msra.mxu0 0.0
    %601 = vmatpush.msra.mxu0 0.0
    %602 = vmatpush.msra.mxu0 0.0
    %603 = vmatpush.msra.mxu0 0.0
    %604 = vmatpush.msra.mxu0 %v578
    %605 = vmatmul.f32.gmra.mxu0 %v584
    %v606 = vpop.f32.mrf.mxu0
    %v607 = vadd.f32 0.0, %v606
    %608 = vmatmul.f32.gmra.mxu0 %v587
    %v609 = vpop.f32.mrf.mxu0
    %v610 = vadd.f32 0.0, %v609
    %611 = vdwg.mxu0
    %612 = vmatpush.msra.mxu0 0.0
    %613 = vmatpush.msra.mxu0 0.0
    %614 = vmatpush.msra.mxu0 0.0
    %615 = vmatpush.msra.mxu0 0.0
    %616 = vmatpush.msra.mxu0 0.0
    %617 = vmatpush.msra.mxu0 0.0
    %618 = vmatpush.msra.mxu0 0.0
    %619 = vmatpush.msra.mxu0 0.0
    %620 = vmatpush.msra.mxu0 0.0
    %621 = vmatpush.msra.mxu0 0.0
    %622 = vmatpush.msra.mxu0 0.0
    %623 = vmatpush.msra.mxu0 0.0
    %624 = vmatpush.msra.mxu0 0.0
    %625 = vmatpush.msra.mxu0 0.0
    %626 = vmatpush.msra.mxu0 0.0
    %627 = vmatpush.msra.mxu0 %v579
    %628 = vmatmul.f32.gmra.mxu0 %v584
    %v629 = vpop.f32.mrf.mxu0
    %v630 = vadd.f32 0.0, %v629
    %631 = vmatmul.f32.gmra.mxu0 %v587
    %v632 = vpop.f32.mrf.mxu0
    %v633 = vadd.f32 0.0, %v632
    %634 = vdwg.mxu0
    %v635 = vadd.f32 %v565, %v607
    %v636 = vadd.f32 %v566, %v630
    %v637 = vadd.f32 %v567, %v610
    %v638 = vadd.f32 %v568, %v633
    %v639 = vmax.f32 %v635, 0.0
    %v640 = vmax.f32 %v636, 0.0
    %v641 = vmax.f32 %v637, 0.0
    %v642 = vmax.f32 %v638, 0.0
    %v643 = vld [vmem:[%s3] sm:$0xff]
    %vm644 = vcmask 130048
    %v646 = vsel %vm644, %v643, 0
    %648 = vmatpush.msra.mxu0 0.0
    %649 = vmatpush.msra.mxu0 0.0
    %650 = vmatpush.msra.mxu0 0.0
    %651 = vmatpush.msra.mxu0 0.0
    %652 = vmatpush.msra.mxu0 0.0
    %653 = vmatpush.msra.mxu0 0.0
    %654 = vmatpush.msra.mxu0 0.0
    %655 = vmatpush.msra.mxu0 0.0
    %656 = vmatpush.msra.mxu0 0.0
    %657 = vmatpush.msra.mxu0 0.0
    %658 = vmatpush.msra.mxu0 0.0
    %659 = vmatpush.msra.mxu0 0.0
    %660 = vmatpush.msra.mxu0 0.0
    %661 = vmatpush.msra.mxu0 0.0
    %662 = vmatpush.msra.mxu0 %v641
    %663 = vmatpush.msra.mxu0 %v639
    %664 = vmatmul.f32.gmra.mxu0 %v646
    %v665 = vpop.f32.mrf.mxu0
    %v666 = vadd.f32 0.0, %v665
    %667 = vdwg.mxu0
    %668 = vmatpush.msra.mxu0 0.0
    %669 = vmatpush.msra.mxu0 0.0
    %670 = vmatpush.msra.mxu0 0.0
    %671 = vmatpush.msra.mxu0 0.0
    %672 = vmatpush.msra.mxu0 0.0
    %673 = vmatpush.msra.mxu0 0.0
    %674 = vmatpush.msra.mxu0 0.0
    %675 = vmatpush.msra.mxu0 0.0
    %676 = vmatpush.msra.mxu0 0.0
    %677 = vmatpush.msra.mxu0 0.0
    %678 = vmatpush.msra.mxu0 0.0
    %679 = vmatpush.msra.mxu0 0.0
    %680 = vmatpush.msra.mxu0 0.0
    %681 = vmatpush.msra.mxu0 0.0
    %682 = vmatpush.msra.mxu0 %v642
    %683 = vmatpush.msra.mxu0 %v640
    %684 = vmatmul.f32.gmra.mxu0 %v646
    %v685 = vpop.f32.mrf.mxu0
    %v686 = vadd.f32 0.0, %v685
    %687 = vdwg.mxu0
    %v688 = vadd.f32 %v18, %v666
    %v689 = vadd.f32 %v19, %v686
    %690 = vst [vmem:[#allocation2] sm:$0xff] %v688
    %691 = vst [vmem:[#allocation2 + $0x8] sm:$0xff] %v689
    // Predicated region
    $region18: #{tpu_custom_call.1} parent=1 // pred_check
      _
    $region19: #{tpu_custom_call.1} parent=1 // pred_check_branch
      %693 = sbr.rel (0) target = $region21
    $region20: #{tpu_custom_call.1} parent=1 // pred_region
      %695 = vsyncadd [#allocation3], 0
      %s697 = sshll.u32 [#allocation2], 4
      %s698 = int_to_ptr.vmem [resolvable:$true] %s697
      %s699 = sshll.u32 %s4, 4
      %s700 = int_to_ptr.hbm [resolvable:$true] %s699
      %702 = dma.vmem_to_hbm [thread:$0]  %s698, 256, %s700, [#allocation3]
    $region21: #{tpu_custom_call.1} parent=1 // pred_fallthru
      _
    // Predicated region
    $region22: #{tpu_custom_call.1} parent=1 // pred_check
      _
    $region23: #{tpu_custom_call.1} parent=1 // pred_check_branch
      %704 = sbr.rel (0) target = $region25
    $region24: #{tpu_custom_call.1} parent=1 // pred_region
      %706 = dma.done [#allocation3], 256
    $region25: #{tpu_custom_call.1} parent=1 // pred_fallthru
      _
    %707 = vsyncpa [#allocation3], 1

</llo_original>
